<compile_context>
chip_gen: v7x
topology: tpu7x:2x2x1
jax: 0.10.0
libtpu: 0.0.40
codegen_flags: <defaults>
</compile_context>

<pallas_src>
import functools

import jax
import jax.numpy as jnp
from jax import lax
from jax.experimental import pallas as pl
from jax.experimental.pallas import tpu as pltpu


def _conloss_kernel(q_ref, qs_ref, k_ref, ks_ref, out_ref,
                    qn_ref, l_ref, m_ref, pos_ref, *,
                    inv_temperature, n_valid, tile_k, use_fixed_shift, has_pad):
    qi = pl.program_id(0)          # query-tile index   (parallel)
    ki = pl.program_id(2)          # key-tile index     (reduction, innermost)
    last_k = pl.num_programs(2) - 1
    inv_t = jnp.float32(inv_temperature)

    @pl.when(ki == 0)
    def _():
        # Hoisted once per (query tile, batch): normalize q (1/T folded into
        # the precomputed scale) and cast to the MXU operand dtype.
        q = q_ref[0].astype(jnp.float32)                       # (dim_p, TQ)
        qn_ref[...] = (q * qs_ref[0]).astype(qn_ref.dtype)
        l_ref[...] = jnp.zeros_like(l_ref)
        if not use_fixed_shift:
            m_ref[...] = jnp.full_like(m_ref, -1e30)

    # Key tile: single broadcast multiply (reciprocal L1 norms precomputed).
    kn = (k_ref[0].astype(jnp.float32) * ks_ref[0]).astype(qn_ref.dtype)
    qn = qn_ref[...]

    @pl.when(ki == qi)
    def _():
        # Positive logit s_ii / T as an elementwise channel dot (diagonal tile).
        pos_ref[...] = jnp.sum(qn.astype(jnp.float32) * kn.astype(jnp.float32),
                               axis=0, keepdims=True)          # (1, TQ)

    # s_t[j, i] = <k_j, q_i> / T  -> (TK, TQ).  Contract axis 0 of both
    # operands: keys on sublanes, queries on lanes, no XLU transpose pass.
    s_t = lax.dot_general(kn, qn,
                          dimension_numbers=(((0,), (0,)), ((), ())),
                          preferred_element_type=jnp.float32)

    if has_pad:
        key_id = lax.broadcasted_iota(jnp.int32, (tile_k, 1), 0) + ki * tile_k
        key_valid = key_id < n_valid                            # (TK, 1)

    if use_fixed_shift:
        # |s_ij| <= 1 after L1 normalization, so logits <= 1/T: a fixed shift
        # of inv_t is exact -- no running max, no rescale.  Padded key columns
        # get a +BIG shift so exp() masks them to 0 with no extra VPU ops.
        if has_pad:
            shift = jnp.where(key_valid, inv_t, jnp.float32(1e30))
        else:
            shift = inv_t
        l_ref[...] += jnp.sum(jnp.exp(s_t - shift), axis=0, keepdims=True)

        @pl.when(ki == last_k)
        def _():
            out_ref[0] = inv_t + jnp.log(l_ref[...]) - pos_ref[...]
    else:
        # Fallback (only for extreme temperatures): classic online logsumexp.
        if has_pad:
            s_t = jnp.where(key_valid, s_t, jnp.float32(-1e30))
        m_prev = m_ref[...]
        m_new = jnp.maximum(m_prev, jnp.max(s_t, axis=0, keepdims=True))
        alpha = jnp.exp(m_prev - m_new)
        l_ref[...] = l_ref[...] * alpha + jnp.sum(jnp.exp(s_t - m_new),
                                                  axis=0, keepdims=True)
        m_ref[...] = m_new

        @pl.when(ki == last_k)
        def _():
            out_ref[0] = m_ref[...] + jnp.log(l_ref[...]) - pos_ref[...]


def con_loss(feat_q, feat_k, temperature=0.07, base_temperature=0.07):
    """Pallas implementation of ConLoss.forward for NCHW inputs.

    base_temperature is accepted for signature parity; the PyTorch forward
    never uses it.
    """
    assert feat_q.shape == feat_k.shape, (feat_q.shape, feat_k.shape)
    b = feat_q.shape[0]
    dim = feat_q.shape[1]
    inv_t = 1.0 / float(temperature)

    # NCHW -> (B, dim, N): no transpose, patches stay on the lane axis.
    q = jnp.reshape(feat_q, (b, dim, -1))
    k = jnp.reshape(feat_k, (b, dim, -1))
    n = q.shape[2]

    # Channel (sublane) pad to a multiple of 16 (bf16 packs 2 rows/sublane);
    # zeros are exact for L1 norms and dot products.
    dim_p = max(16, ((dim + 15) // 16) * 16)

    # Square tile: biggest of {512, 256, 128} that adds no padding beyond the
    # 128-granularity, then shrink if the VMEM footprint nears the budget
    # (conservative for v7x's 64 MiB physical VMEM).
    n128 = ((n + 127) // 128) * 128
    tile = 128
    for cand in (512, 256):
        if ((n + cand - 1) // cand) * cand == n128:
            tile = cand
            break
    matmul_dtype = jnp.bfloat16 if dim_p >= 64 else jnp.float32
    mm_bytes = 2 if matmul_dtype == jnp.bfloat16 else 4

    def _est_vmem(t):
        return (4 * dim_p * t * 4        # q, k blocks, double-buffered, f32
                + dim_p * t * mm_bytes   # qn scratch
                + 4 * t * t * 4          # s_t / exp temporaries (conservative)
                + 16 * t * 4)            # scales, row scratch, output
    while tile > 128 and _est_vmem(tile) > 24 * 1024 * 1024:
        tile //= 2

    n_pad = ((n + tile - 1) // tile) * tile
    num_tiles = n_pad // tile
    has_pad = n_pad != n

    if dim_p != dim or has_pad:
        pad = ((0, 0), (0, dim_p - dim), (0, n_pad - n))
        q = jnp.pad(q, pad)
        k = jnp.pad(k, pad)

    # Per-patch reciprocal L1 norms, precomputed once (O(B*N*dim)); 1/T folded
    # into the q scale so the matmul output is already the logits.
    qf = q.astype(jnp.float32)
    kf = k.astype(jnp.float32)
    eps = jnp.float32(1e-12)
    q_scale = inv_t / jnp.maximum(jnp.sum(jnp.abs(qf), axis=1, keepdims=True), eps)
    k_scale = 1.0 / jnp.maximum(jnp.sum(jnp.abs(kf), axis=1, keepdims=True), eps)

    # Fixed shift is exact (|logit| <= 1/T); only fall back to a running max
    # when exp(-2/T) would fully underflow in f32.
    use_fixed_shift = (2.0 * inv_t) <= 70.0

    kernel = functools.partial(
        _conloss_kernel,
        inv_temperature=inv_t,
        n_valid=n,
        tile_k=tile,
        use_fixed_shift=use_fixed_shift,
        has_pad=has_pad,
    )

    row_losses = pl.pallas_call(
        kernel,
        out_shape=jax.ShapeDtypeStruct((b, 1, n_pad), jnp.float32),
        grid_spec=pltpu.PrefetchScalarGridSpec(
            num_scalar_prefetch=0,
            grid=(num_tiles, b, num_tiles),        # (query tile, batch, key tile)
            in_specs=[
                pl.BlockSpec((1, dim_p, tile), lambda qi, bi, ki: (bi, 0, qi)),  # q
                pl.BlockSpec((1, 1, tile),     lambda qi, bi, ki: (bi, 0, qi)),  # q scale
                pl.BlockSpec((1, dim_p, tile), lambda qi, bi, ki: (bi, 0, ki)),  # k
                pl.BlockSpec((1, 1, tile),     lambda qi, bi, ki: (bi, 0, ki)),  # k scale
            ],
            # Per-(batch, query-tile) lane-dense output block; written back as
            # soon as its (bi, qi) slice of the grid completes.
            out_specs=pl.BlockSpec((1, 1, tile), lambda qi, bi, ki: (bi, 0, qi)),
            scratch_shapes=[
                pltpu.VMEM((dim_p, tile), matmul_dtype),  # normalized q tile (1/T folded)
                pltpu.VMEM((1, tile), jnp.float32),       # running sum of exp
                pltpu.VMEM((1, tile), jnp.float32),       # running max (fallback path only)
                pltpu.VMEM((1, tile), jnp.float32),       # positive logits s_ii / T
            ],
        ),
        compiler_params=pltpu.CompilerParams(
            dimension_semantics=("parallel", "parallel", "arbitrary"),
            vmem_limit_bytes=32 * 1024 * 1024,
        ),
    )(q, q_scale, k, k_scale)

    # torch.nn.CrossEntropyLoss default reduction: mean over the B*N real rows
    # (padded query rows excluded).
    return jnp.mean(row_losses[:, 0, :n])


def _con_loss_ref(feat_q, feat_k, temperature=0.07):
    """Pure-JAX reference mirroring the PyTorch forward (for verification)."""
    b = feat_q.shape[0]
    dim = feat_q.shape[1]
    q = jnp.reshape(feat_q, (b, dim, -1)).transpose(0, 2, 1)
    k = jnp.reshape(feat_k, (b, dim, -1)).transpose(0, 2, 1)
    qn = q / jnp.maximum(jnp.sum(jnp.abs(q), -1, keepdims=True), 1e-12)
    kn = k / jnp.maximum(jnp.sum(jnp.abs(k), -1, keepdims=True), 1e-12)
    l_pos = jnp.sum(qn * kn, -1).reshape(-1, 1)
    s = jnp.einsum("bnd,bmd->bnm", qn, kn)
    n = s.shape[1]
    eye = jnp.eye(n, dtype=bool)[None]
    l_neg = jnp.where(eye, -jnp.inf, s).reshape(-1, n)
    out = jnp.concatenate([l_pos, l_neg], axis=1) / temperature
    lse = jax.scipy.special.logsumexp(out, axis=1)
    return jnp.mean(lse - out[:, 0])


if __name__ == "__main__":
    key = jax.random.PRNGKey(0)
    kq, kk, kq2, kk2 = jax.random.split(key, 4)

    # Test 1: small NCHW features (f32 MXU path, N divisible by 128, no pad).
    feat_q = jax.random.normal(kq, (2, 4, 16, 16), dtype=jnp.float32)
    feat_k = jax.random.normal(kk, (2, 4, 16, 16), dtype=jnp.float32)
    loss = jax.jit(con_loss)(feat_q, feat_k)
    jax.block_until_ready(loss)
    ref = _con_loss_ref(feat_q, feat_k)
    assert jnp.isfinite(loss), loss
    assert jnp.abs(loss - ref) < 1e-3, (loss, ref)

    # Test 2: larger channel count (bf16 MXU operands) and a patch count that
    # is NOT a multiple of 128 (exercises N-padding + key masking).
    feat_q2 = jax.random.normal(kq2, (2, 96, 18, 18), dtype=jnp.float32)
    feat_k2 = jax.random.normal(kk2, (2, 96, 18, 18), dtype=jnp.float32)
    loss2 = jax.jit(con_loss)(feat_q2, feat_k2)
    jax.block_until_ready(loss2)
    ref2 = _con_loss_ref(feat_q2, feat_k2)
    assert jnp.isfinite(loss2), loss2
    assert jnp.abs(loss2 - ref2) < 2e-2, (loss2, ref2)

    print("KERNEL_OK")
</pallas_src>

<mosaic_0001>
module attributes {stable_mosaic.version = 11 : i64} {
  func.func @_conloss_kernel(%arg0: i32, %arg1: i32, %arg2: i32, %arg3: memref<1x16x256xf32, #tpu.memory_space<vmem>>, %arg4: memref<1x1x256xf32, #tpu.memory_space<vmem>>, %arg5: memref<1x16x256xf32, #tpu.memory_space<vmem>>, %arg6: memref<1x1x256xf32, #tpu.memory_space<vmem>>, %arg7: memref<1x1x256xf32, #tpu.memory_space<vmem>>, %arg8: memref<16x256xf32, #tpu.memory_space<vmem>>, %arg9: memref<1x256xf32, #tpu.memory_space<vmem>>, %arg10: memref<1x256xf32, #tpu.memory_space<vmem>>, %arg11: memref<1x256xf32, #tpu.memory_space<vmem>>) attributes {dimension_semantics = [#tpu.dimension_semantics<parallel>, #tpu.dimension_semantics<parallel>, #tpu.dimension_semantics<arbitrary>], iteration_bounds = array<i64: 1, 2, 1>, scalar_prefetch = 0 : i64, scratch_operands = 4 : i64, tpu.core_type = #tpu.core_type<tc>, window_params = [{transform_indices = @transform_0, window_bounds = array<i64: 1, 16, 256>}, {transform_indices = @transform_1, window_bounds = array<i64: 1, 1, 256>}, {transform_indices = @transform_2, window_bounds = array<i64: 1, 16, 256>}, {transform_indices = @transform_3, window_bounds = array<i64: 1, 1, 256>}, {transform_indices = @transform_4, window_bounds = array<i64: 1, 1, 256>}]} {
    %c0_i32 = arith.constant 0 : i32
    %0 = arith.cmpi eq, %arg2, %c0_i32 : i32
    %1 = arith.extui %0 : i1 to i32
    %c0_i32_0 = arith.constant 0 : i32
    %2 = arith.cmpi ne, %1, %c0_i32_0 : i32
    scf.if %2 {
      %c0_18 = arith.constant 0 : index
      %c0_19 = arith.constant 0 : index
      %c0_20 = arith.constant 0 : index
      %25 = vector.load %arg3[%c0_18, %c0_19, %c0_20] : memref<1x16x256xf32, #tpu.memory_space<vmem>>, vector<1x16x256xf32>
      %26 = vector.shape_cast %25 : vector<1x16x256xf32> to vector<16x256xf32>
      %c0_21 = arith.constant 0 : index
      %c0_22 = arith.constant 0 : index
      %c0_23 = arith.constant 0 : index
      %27 = vector.load %arg4[%c0_21, %c0_22, %c0_23] : memref<1x1x256xf32, #tpu.memory_space<vmem>>, vector<1x1x256xf32>
      %28 = vector.shape_cast %27 : vector<1x1x256xf32> to vector<1x256xf32>
      %29 = vector.broadcast %28 : vector<1x256xf32> to vector<16x256xf32>
      %30 = arith.mulf %26, %29 : vector<16x256xf32>
      %c0_24 = arith.constant 0 : index
      %c0_25 = arith.constant 0 : index
      %31 = vector.load %arg8[%c0_24, %c0_25] : memref<16x256xf32, #tpu.memory_space<vmem>>, vector<16x256xf32>
      tpu.vector_store %arg8[%c0_24, %c0_25], %30 {strides = array<i32>} : memref<16x256xf32, #tpu.memory_space<vmem>>, vector<16x256xf32>,
      %cst_26 = arith.constant 0.000000e+00 : f32
      %32 = vector.broadcast %cst_26 : f32 to vector<1x256xf32>
      %c0_27 = arith.constant 0 : index
      %c0_28 = arith.constant 0 : index
      %33 = vector.load %arg9[%c0_27, %c0_28] : memref<1x256xf32, #tpu.memory_space<vmem>>, vector<1x256xf32>
      tpu.vector_store %arg9[%c0_27, %c0_28], %32 {strides = array<i32>} : memref<1x256xf32, #tpu.memory_space<vmem>>, vector<1x256xf32>,
    } else {
    }
    %c0 = arith.constant 0 : index
    %c0_1 = arith.constant 0 : index
    %c0_2 = arith.constant 0 : index
    %3 = vector.load %arg5[%c0, %c0_1, %c0_2] : memref<1x16x256xf32, #tpu.memory_space<vmem>>, vector<1x16x256xf32>
    %4 = vector.shape_cast %3 : vector<1x16x256xf32> to vector<16x256xf32>
    %c0_3 = arith.constant 0 : index
    %c0_4 = arith.constant 0 : index
    %c0_5 = arith.constant 0 : index
    %5 = vector.load %arg6[%c0_3, %c0_4, %c0_5] : memref<1x1x256xf32, #tpu.memory_space<vmem>>, vector<1x1x256xf32>
    %6 = vector.shape_cast %5 : vector<1x1x256xf32> to vector<1x256xf32>
    %7 = vector.broadcast %6 : vector<1x256xf32> to vector<16x256xf32>
    %8 = arith.mulf %4, %7 : vector<16x256xf32>
    %c0_6 = arith.constant 0 : index
    %c0_7 = arith.constant 0 : index
    %9 = vector.load %arg8[%c0_6, %c0_7] : memref<16x256xf32, #tpu.memory_space<vmem>>, vector<16x256xf32>
    %10 = arith.cmpi eq, %arg2, %arg0 : i32
    %11 = arith.extui %10 : i1 to i32
    %c0_i32_8 = arith.constant 0 : i32
    %12 = arith.cmpi ne, %11, %c0_i32_8 : i32
    scf.if %12 {
      %25 = arith.mulf %9, %8 : vector<16x256xf32>
      %cst_18 = arith.constant dense<0.000000e+00> : vector<256xf32>
      %26 = vector.multi_reduction <add>, %25, %cst_18 [0] : vector<16x256xf32> to vector<256xf32>
      %27 = vector.shape_cast %26 : vector<256xf32> to vector<1x256xf32>
      %c0_19 = arith.constant 0 : index
      %c0_20 = arith.constant 0 : index
      %28 = vector.load %arg11[%c0_19, %c0_20] : memref<1x256xf32, #tpu.memory_space<vmem>>, vector<1x256xf32>
      tpu.vector_store %arg11[%c0_19, %c0_20], %27 {strides = array<i32>} : memref<1x256xf32, #tpu.memory_space<vmem>>, vector<1x256xf32>,
    } else {
    }
    %cst = arith.constant dense<0.000000e+00> : vector<256x256xf32>
    %13 = tpu.matmul %8, %9, %cst {dimension_numbers = #tpu.dot_dimension_numbers<[0], [0], [1], [1], [0, 1, 1, 1], [], []>} : vector<16x256xf32>, vector<16x256xf32>, vector<256x256xf32> -> vector<256x256xf32>
    %c0_9 = arith.constant 0 : index
    %c0_10 = arith.constant 0 : index
    %14 = vector.load %arg9[%c0_9, %c0_10] : memref<1x256xf32, #tpu.memory_space<vmem>>, vector<1x256xf32>
    %cst_11 = arith.constant 14.2857141 : f32
    %15 = vector.broadcast %cst_11 : f32 to vector<256x256xf32>
    %16 = arith.subf %13, %15 : vector<256x256xf32>
    %17 = math.exp %16 : vector<256x256xf32>
    %cst_12 = arith.constant dense<0.000000e+00> : vector<256xf32>
    %18 = vector.multi_reduction <add>, %17, %cst_12 [0] : vector<256x256xf32> to vector<256xf32>
    %19 = vector.shape_cast %18 : vector<256xf32> to vector<1x256xf32>
    %20 = arith.addf %14, %19 : vector<1x256xf32>
    %c0_13 = arith.constant 0 : index
    %c0_14 = arith.constant 0 : index
    %21 = vector.load %arg9[%c0_13, %c0_14] : memref<1x256xf32, #tpu.memory_space<vmem>>, vector<1x256xf32>
    tpu.vector_store %arg9[%c0_13, %c0_14], %20 {strides = array<i32>} : memref<1x256xf32, #tpu.memory_space<vmem>>, vector<1x256xf32>,
    %c0_i32_15 = arith.constant 0 : i32
    %22 = arith.cmpi eq, %arg2, %c0_i32_15 : i32
    %23 = arith.extui %22 : i1 to i32
    %cst_16 = arith.constant 14.2857141 : f32
    %c0_i32_17 = arith.constant 0 : i32
    %24 = arith.cmpi ne, %23, %c0_i32_17 : i32
    scf.if %24 {
      %c0_18 = arith.constant 0 : index
      %c0_19 = arith.constant 0 : index
      %25 = vector.load %arg9[%c0_18, %c0_19] : memref<1x256xf32, #tpu.memory_space<vmem>>, vector<1x256xf32>
      %26 = math.log %25 : vector<1x256xf32>
      %27 = vector.broadcast %cst_16 : f32 to vector<1x256xf32>
      %28 = arith.addf %27, %26 : vector<1x256xf32>
      %c0_20 = arith.constant 0 : index
      %c0_21 = arith.constant 0 : index
      %29 = vector.load %arg11[%c0_20, %c0_21] : memref<1x256xf32, #tpu.memory_space<vmem>>, vector<1x256xf32>
      %30 = arith.subf %28, %29 : vector<1x256xf32>
      %c0_22 = arith.constant 0 : index
      %c0_23 = arith.constant 0 : index
      %c0_24 = arith.constant 0 : index
      %31 = vector.load %arg7[%c0_22, %c0_23, %c0_24] : memref<1x1x256xf32, #tpu.memory_space<vmem>>, vector<1x1x256xf32>
      %32 = vector.shape_cast %31 : vector<1x1x256xf32> to vector<1x256xf32>
      %33 = vector.shape_cast %30 : vector<1x256xf32> to vector<1x1x256xf32>
      tpu.vector_store %arg7[%c0_22, %c0_23, %c0_24], %33 {strides = array<i32>} : memref<1x1x256xf32, #tpu.memory_space<vmem>>, vector<1x1x256xf32>,
    } else {
    }
    return
  }
  func.func @transform_0(%arg0: i32, %arg1: i32, %arg2: i32) -> (i32, i32, i32) {
    %c0_i32 = arith.constant 0 : i32
    %c0_i32_0 = arith.constant 0 : i32
    return %arg1, %c0_i32, %arg0 : i32, i32, i32
  }
  func.func @transform_1(%arg0: i32, %arg1: i32, %arg2: i32) -> (i32, i32, i32) {
    %c0_i32 = arith.constant 0 : i32
    %c0_i32_0 = arith.constant 0 : i32
    return %arg1, %c0_i32, %arg0 : i32, i32, i32
  }
  func.func @transform_2(%arg0: i32, %arg1: i32, %arg2: i32) -> (i32, i32, i32) {
    %c0_i32 = arith.constant 0 : i32
    %c0_i32_0 = arith.constant 0 : i32
    return %arg1, %c0_i32, %arg2 : i32, i32, i32
  }
  func.func @transform_3(%arg0: i32, %arg1: i32, %arg2: i32) -> (i32, i32, i32) {
    %c0_i32 = arith.constant 0 : i32
    %c0_i32_0 = arith.constant 0 : i32
    return %arg1, %c0_i32, %arg2 : i32, i32, i32
  }
  func.func @transform_4(%arg0: i32, %arg1: i32, %arg2: i32) -> (i32, i32, i32) {
    %c0_i32 = arith.constant 0 : i32
    %c0_i32_0 = arith.constant 0 : i32
    return %arg1, %c0_i32, %arg0 : i32, i32, i32
  }
}

</mosaic_0001>

<llo_original>
// kernel: con_loss.1
$region0: #{con_loss.1}
  #allocation0 [shape = 'u32[]', space=smem, size = 0x4, offset = 0x4, fixed_abs, tag = 'smem constant byte address 0x4 - core index']
  #allocation1 [shape = 'u32[144,128]{1,0:T(1,128)}', space=vmem, size = 0x12000, scoped, tag = 'internal scratch']
  #allocation2 [shape = 'f32[16,256]{1,0:T(8,128)}', space=vmem, size = 0x4000, scoped, tag = 'scratch operand']
  #allocation3 [shape = 'f32[1,256]{1,0:T(1,128)}', space=vmem, size = 0x400, scoped, tag = 'scratch operand']
  #allocation4 [shape = 'f32[1,256]{1,0:T(1,128)}', space=vmem, size = 0x400, scoped, tag = 'scratch operand']
  #allocation5 [shape = 'f32[1,256]{1,0:T(1,128)}', space=vmem, size = 0x400, scoped, tag = 'scratch operand']
  %s0 = inlined_call_operand.vmem [shape: f32[2,16,256], index: 0, kind: input, shape index: {}]
  %s1 = inlined_call_operand.vmem [shape: f32[2,1,256], index: 1, kind: input, shape index: {}]
  %s2 = inlined_call_operand.vmem [shape: f32[2,16,256], index: 2, kind: input, shape index: {}]
  %s3 = inlined_call_operand.vmem [shape: f32[2,1,256], index: 3, kind: input, shape index: {}]
  %s4 = inlined_call_operand.vmem [shape: f32[2,1,256], index: 4, kind: output, shape index: {}]
  %s5 = sld [smem:[#allocation0]]
  $region61: #{con_loss.1} parent=0
    _
  %s7 = ssub.s32 1, %s5
  %s8 = scalar_select 0, %s7, %s5
  loop: start=0, step=1, limit=4
  $region2: #{con_loss.1} parent=0 // loop_pre_header
    _
  $region3: #{con_loss.1} parent=0 // loop_header
    %s10 = sphi 0, %s14
    %p11 = scmp.ge.s32.totalorder %s10, 4
    %s17 = sphi 0, %s36
    %s18 = sphi 0, %s32
    %s19 = sphi 0, %s28
    %s20 = sphi 0, %s17
    %s21 = sphi 0, %s18
    %s22 = sphi 0, %s19
    %s23 = sphi 0, %s20
    %s24 = sphi 0, %s21
    %s25 = sphi 0, %s22
    %s41 = sphi 0, %s43
    %s44 = sphi 0, %s41
    %s45 = sphi 0, %s44
    %s61 = sphi 0, %s45
    %s69 = sphi 0, %s71
    %s72 = sphi 0, %s69
    %s73 = sphi 0, %s72
    %s89 = sphi 0, %s73
    %s97 = sphi 0, %s99
    %s100 = sphi 0, %s97
    %s101 = sphi 0, %s100
    %s117 = sphi 0, %s101
    %s125 = sphi 0, %s127
    %s128 = sphi 0, %s125
    %s129 = sphi 0, %s128
    %s145 = sphi 0, %s129
    %s153 = sphi 0, %s155
    %s156 = sphi 0, %s153
    %s157 = sphi 0, %s156
    %s173 = sphi 0, %s157
  $region4: #{con_loss.1} parent=0 // loop_header_branch
    %13 = sbr.rel (%p11) target = $region8
  $region5: #{con_loss.1} parent=0 // loop_body
    %s15 = ssub.s32 %s10, 1
    %s16 = ssub.s32 %s10, 2
    %s26 = sadd.s32 1, %s19
    %p27 = scmp.ge.s32.totalorder %s26, 1
    %s28 = scalar_select %p27, 0, %s26
    %s29 = sadd.s32 1, %s18
    %s30 = scalar_select %p27, %s29, %s18
    %p31 = scmp.ge.s32.totalorder %s30, 2
    %s32 = scalar_select %p31, 0, %s30
    %s33 = sadd.s32 1, %s17
    %s34 = scalar_select %p31, %s33, %s17
    %p35 = scmp.ge.s32.totalorder %s34, 1
    %s36 = scalar_select %p35, 0, %s34
    %s37 = ssub.s32 %s18, %s32
    %s38 = ssub.s32 %s17, %s36
    %s39 = sor.u32 %s37, %s38
    %p40 = scmp.eq.s32.totalorder %s39, 0
    %s42 = sadd.s32 %s41, 1
    %s43 = scalar_select %p40, %s41, %s42
    %p46 = pneg %p40
    %p47 = scmp.eq.s32.totalorder %s10, 1
    %p48 = por %p46, %p47
    %p49 = scmp.ne.s32.totalorder %s41, %s44
    %p50 = scmp.eq.s32.totalorder %s10, 0
    %p51 = por %p49, %p50
    %p52 = scmp.ne.s32.totalorder %s41, %s44
    %p53 = scmp.eq.s32.totalorder %s15, 1
    %p54 = por %p52, %p53
    %p55 = scmp.ne.s32.totalorder %s44, %s45
    %p56 = scmp.eq.s32.totalorder %s15, 0
    %p57 = por %p55, %p56
    %p58 = scmp.ne.s32.totalorder %s44, %s45
    %p59 = scmp.eq.s32.totalorder %s16, 1
    %p60 = por %p58, %p59
    %p62 = scmp.ne.s32.totalorder %s45, %s61
    %p63 = scmp.eq.s32.totalorder %s16, 0
    %p64 = por %p62, %p63
    %s65 = ssub.s32 %s18, %s32
    %s66 = ssub.s32 %s17, %s36
    %s67 = sor.u32 %s65, %s66
    %p68 = scmp.eq.s32.totalorder %s67, 0
    %s70 = sadd.s32 %s69, 1
    %s71 = scalar_select %p68, %s69, %s70
    %p74 = pneg %p68
    %p75 = scmp.eq.s32.totalorder %s10, 1
    %p76 = por %p74, %p75
    %p77 = scmp.ne.s32.totalorder %s69, %s72
    %p78 = scmp.eq.s32.totalorder %s10, 0
    %p79 = por %p77, %p78
    %p80 = scmp.ne.s32.totalorder %s69, %s72
    %p81 = scmp.eq.s32.totalorder %s15, 1
    %p82 = por %p80, %p81
    %p83 = scmp.ne.s32.totalorder %s72, %s73
    %p84 = scmp.eq.s32.totalorder %s15, 0
    %p85 = por %p83, %p84
    %p86 = scmp.ne.s32.totalorder %s72, %s73
    %p87 = scmp.eq.s32.totalorder %s16, 1
    %p88 = por %p86, %p87
    %p90 = scmp.ne.s32.totalorder %s73, %s89
    %p91 = scmp.eq.s32.totalorder %s16, 0
    %p92 = por %p90, %p91
    %s93 = ssub.s32 %s18, %s32
    %s94 = ssub.s32 %s19, %s28
    %s95 = sor.u32 %s93, %s94
    %p96 = scmp.eq.s32.totalorder %s95, 0
    %s98 = sadd.s32 %s97, 1
    %s99 = scalar_select %p96, %s97, %s98
    %p102 = pneg %p96
    %p103 = scmp.eq.s32.totalorder %s10, 1
    %p104 = por %p102, %p103
    %p105 = scmp.ne.s32.totalorder %s97, %s100
    %p106 = scmp.eq.s32.totalorder %s10, 0
    %p107 = por %p105, %p106
    %p108 = scmp.ne.s32.totalorder %s97, %s100
    %p109 = scmp.eq.s32.totalorder %s15, 1
    %p110 = por %p108, %p109
    %p111 = scmp.ne.s32.totalorder %s100, %s101
    %p112 = scmp.eq.s32.totalorder %s15, 0
    %p113 = por %p111, %p112
    %p114 = scmp.ne.s32.totalorder %s100, %s101
    %p115 = scmp.eq.s32.totalorder %s16, 1
    %p116 = por %p114, %p115
    %p118 = scmp.ne.s32.totalorder %s101, %s117
    %p119 = scmp.eq.s32.totalorder %s16, 0
    %p120 = por %p118, %p119
    %s121 = ssub.s32 %s18, %s32
    %s122 = ssub.s32 %s19, %s28
    %s123 = sor.u32 %s121, %s122
    %p124 = scmp.eq.s32.totalorder %s123, 0
    %s126 = sadd.s32 %s125, 1
    %s127 = scalar_select %p124, %s125, %s126
    %p130 = pneg %p124
    %p131 = scmp.eq.s32.totalorder %s10, 1
    %p132 = por %p130, %p131
    %p133 = scmp.ne.s32.totalorder %s125, %s128
    %p134 = scmp.eq.s32.totalorder %s10, 0
    %p135 = por %p133, %p134
    %p136 = scmp.ne.s32.totalorder %s125, %s128
    %p137 = scmp.eq.s32.totalorder %s15, 1
    %p138 = por %p136, %p137
    %p139 = scmp.ne.s32.totalorder %s128, %s129
    %p140 = scmp.eq.s32.totalorder %s15, 0
    %p141 = por %p139, %p140
    %p142 = scmp.ne.s32.totalorder %s128, %s129
    %p143 = scmp.eq.s32.totalorder %s16, 1
    %p144 = por %p142, %p143
    %p146 = scmp.ne.s32.totalorder %s129, %s145
    %p147 = scmp.eq.s32.totalorder %s16, 0
    %p148 = por %p146, %p147
    %s149 = ssub.s32 %s18, %s32
    %s150 = ssub.s32 %s17, %s36
    %s151 = sor.u32 %s149, %s150
    %p152 = scmp.eq.s32.totalorder %s151, 0
    %s154 = sadd.s32 %s153, 1
    %s155 = scalar_select %p152, %s153, %s154
    %p158 = pneg %p152
    %p159 = scmp.eq.s32.totalorder %s10, 1
    %p160 = por %p158, %p159
    %p161 = scmp.ne.s32.totalorder %s153, %s156
    %p162 = scmp.eq.s32.totalorder %s10, 0
    %p163 = por %p161, %p162
    %p164 = scmp.ne.s32.totalorder %s153, %s156
    %p165 = scmp.eq.s32.totalorder %s15, 1
    %p166 = por %p164, %p165
    %p167 = scmp.ne.s32.totalorder %s156, %s157
    %p168 = scmp.eq.s32.totalorder %s15, 0
    %p169 = por %p167, %p168
    %p170 = scmp.ne.s32.totalorder %s156, %s157
    %p171 = scmp.eq.s32.totalorder %s16, 1
    %p172 = por %p170, %p171
    %p174 = scmp.ne.s32.totalorder %s157, %s173
    %p175 = scmp.eq.s32.totalorder %s16, 0
    %p176 = por %p174, %p175
    %p177 = scmp.le.s32.totalorder 1, %s10
    %p178 = scmp.lt.s32.totalorder %s10, 3
    %p179 = pnand %p177, %p178
    %p180 = pneg %p179
    // Predicated region
    $region9: #{con_loss.1} parent=5 // pred_check
      _
    $region10: #{con_loss.1} parent=5 // pred_check_branch
      %182 = sbr.rel (%p179) target = $region12
    $region11: #{con_loss.1} parent=5 // pred_region
      %s183 = ssub.s32 %s10, 1
    $region12: #{con_loss.1} parent=5 // pred_fallthru
      _
    %p184 = scmp.lt.s32.totalorder %s10, 2
    // Predicated region
    $region13: #{con_loss.1} parent=5 // pred_check
      %p185 = pneg %p184
    $region14: #{con_loss.1} parent=5 // pred_check_branch
      %187 = sbr.rel (%p185) target = $region16
    $region15: #{con_loss.1} parent=5 // pred_region
      // Predicated region
      $region17: #{con_loss.1} parent=15 // pred_check
        %p188 = pneg %p51
      $region18: #{con_loss.1} parent=15 // pred_check_branch
        %190 = sbr.rel (%p188) target = $region20
      $region19: #{con_loss.1} parent=15 // pred_region
        %s191 = smul.u32 2, %s17
        %p192 = scmp.lt.s32.totalorder %s18, 1
        %s193 = scalar_select %p192, %s18, 1
        %p194 = scmp.lt.s32.totalorder %s191, 1
        %s195 = scalar_select %p194, %s191, 1
        %s196 = smul.addr %s193, 4
        %s197 = sadd.s32 %s195, %s196
        %s198 = smul.addr %s197, 8
        %s199 = scalar_lea.vmem %s0, %s198
        %s200 = smul.u32 2, %s17
      $region20: #{con_loss.1} parent=15 // pred_fallthru
        _
      // Predicated region
      $region21: #{con_loss.1} parent=15 // pred_check
        %p201 = pneg %p79
      $region22: #{con_loss.1} parent=15 // pred_check_branch
        %203 = sbr.rel (%p201) target = $region24
      $region23: #{con_loss.1} parent=15 // pred_region
        %s204 = smul.u32 2, %s17
        %p205 = scmp.lt.s32.totalorder %s18, 1
        %s206 = scalar_select %p205, %s18, 1
        %p207 = scmp.lt.s32.totalorder %s204, 1
        %s208 = scalar_select %p207, %s204, 1
        %s209 = smul.addr %s206, 2
        %s210 = sadd.s32 %s208, %s209
        %s211 = scalar_lea.vmem %s1, %s210
        %s212 = smul.u32 2, %s17
      $region24: #{con_loss.1} parent=15 // pred_fallthru
        _
      // Predicated region
      $region25: #{con_loss.1} parent=15 // pred_check
        %p213 = pneg %p107
      $region26: #{con_loss.1} parent=15 // pred_check_branch
        %215 = sbr.rel (%p213) target = $region28
      $region27: #{con_loss.1} parent=15 // pred_region
        %s216 = smul.u32 2, %s19
        %p217 = scmp.lt.s32.totalorder %s18, 1
        %s218 = scalar_select %p217, %s18, 1
        %p219 = scmp.lt.s32.totalorder %s216, 1
        %s220 = scalar_select %p219, %s216, 1
        %s221 = smul.addr %s218, 4
        %s222 = sadd.s32 %s220, %s221
        %s223 = smul.addr %s222, 8
        %s224 = scalar_lea.vmem %s2, %s223
        %s225 = smul.u32 2, %s19
      $region28: #{con_loss.1} parent=15 // pred_fallthru
        _
      // Predicated region
      $region29: #{con_loss.1} parent=15 // pred_check
        %p226 = pneg %p135
      $region30: #{con_loss.1} parent=15 // pred_check_branch
        %228 = sbr.rel (%p226) target = $region32
      $region31: #{con_loss.1} parent=15 // pred_region
        %s229 = smul.u32 2, %s19
        %p230 = scmp.lt.s32.totalorder %s18, 1
        %s231 = scalar_select %p230, %s18, 1
        %p232 = scmp.lt.s32.totalorder %s229, 1
        %s233 = scalar_select %p232, %s229, 1
        %s234 = smul.addr %s231, 2
        %s235 = sadd.s32 %s233, %s234
        %s236 = scalar_lea.vmem %s3, %s235
        %s237 = smul.u32 2, %s19
      $region32: #{con_loss.1} parent=15 // pred_fallthru
        _
    $region16: #{con_loss.1} parent=5 // pred_fallthru
      _
    %p238 = scmp.le.s32.totalorder 1, %s10
    %p239 = scmp.lt.s32.totalorder %s10, 3
    %p240 = pnand %p238, %p239
    %p241 = pneg %p240
    // Predicated region
    $region33: #{con_loss.1} parent=5 // pred_check
      _
    $region34: #{con_loss.1} parent=5 // pred_check_branch
      %243 = sbr.rel (%p240) target = $region36
    $region35: #{con_loss.1} parent=5 // pred_region
      %s244 = ssub.s32 %s10, 1
      %s245 = smul.u32 2, %s20
      %p246 = scmp.lt.s32.totalorder %s21, 1
      %s247 = scalar_select %p246, %s21, 1
      %p248 = scmp.lt.s32.totalorder %s245, 1
      %s249 = scalar_select %p248, %s245, 1
      %s250 = smul.addr %s247, 4
      %s251 = sadd.s32 %s249, %s250
      %s252 = smul.addr %s251, 8
      %s253 = scalar_lea.vmem %s0, %s252
      %p254 = pneg %p57
      %p255 = pneg %p54
      %s256 = smul.u32 2, %s20
      %p257 = scmp.lt.s32.totalorder %s21, 1
      %s258 = scalar_select %p257, %s21, 1
      %p259 = scmp.lt.s32.totalorder %s256, 1
      %s260 = scalar_select %p259, %s256, 1
      %s261 = smul.addr %s258, 2
      %s262 = sadd.s32 %s260, %s261
      %s263 = scalar_lea.vmem %s1, %s262
      %p264 = pneg %p85
      %p265 = pneg %p82
      %s266 = smul.u32 2, %s22
      %p267 = scmp.lt.s32.totalorder %s21, 1
      %s268 = scalar_select %p267, %s21, 1
      %p269 = scmp.lt.s32.totalorder %s266, 1
      %s270 = scalar_select %p269, %s266, 1
      %s271 = smul.addr %s268, 4
      %s272 = sadd.s32 %s270, %s271
      %s273 = smul.addr %s272, 8
      %s274 = scalar_lea.vmem %s2, %s273
      %p275 = pneg %p113
      %p276 = pneg %p110
      %s277 = smul.u32 2, %s22
      %p278 = scmp.lt.s32.totalorder %s21, 1
      %s279 = scalar_select %p278, %s21, 1
      %p280 = scmp.lt.s32.totalorder %s277, 1
      %s281 = scalar_select %p280, %s277, 1
      %s282 = smul.addr %s279, 2
      %s283 = sadd.s32 %s281, %s282
      %s284 = scalar_lea.vmem %s3, %s283
      %p285 = pneg %p141
      %p286 = pneg %p138
      %p287 = pneg %p169
      %p288 = pneg %p166
      %s289 = smul.u32 2, %s20
      %p290 = scmp.lt.s32.totalorder %s21, 1
      %s291 = scalar_select %p290, %s21, 1
      %p292 = scmp.lt.s32.totalorder %s289, 1
      %s293 = scalar_select %p292, %s289, 1
      %s294 = smul.addr %s291, 2
      %s295 = sadd.s32 %s293, %s294
      %s296 = scalar_lea.vmem %s4, %s295
      %s297 = smul.u32 2, %s20
      %p298 = scmp.lt.s32.totalorder %s21, 1
      %s299 = scalar_select %p298, %s21, 1
      %p300 = scmp.lt.s32.totalorder %s297, 1
      %s301 = scalar_select %p300, %s297, 1
      %s302 = smul.addr %s299, 4
      %s303 = sadd.s32 %s301, %s302
      %s304 = smul.addr %s303, 8
      %s305 = scalar_lea.vmem %s0, %s304
      %s306 = smul.u32 2, %s20
      %s307 = smul.u32 2, %s20
      %p308 = scmp.lt.s32.totalorder %s21, 1
      %s309 = scalar_select %p308, %s21, 1
      %p310 = scmp.lt.s32.totalorder %s307, 1
      %s311 = scalar_select %p310, %s307, 1
      %s312 = smul.addr %s309, 2
      %s313 = sadd.s32 %s311, %s312
      %s314 = scalar_lea.vmem %s1, %s313
      %s315 = smul.u32 2, %s20
      %s316 = smul.u32 2, %s22
      %p317 = scmp.lt.s32.totalorder %s21, 1
      %s318 = scalar_select %p317, %s21, 1
      %p319 = scmp.lt.s32.totalorder %s316, 1
      %s320 = scalar_select %p319, %s316, 1
      %s321 = smul.addr %s318, 4
      %s322 = sadd.s32 %s320, %s321
      %s323 = smul.addr %s322, 8
      %s324 = scalar_lea.vmem %s2, %s323
      %s325 = smul.u32 2, %s22
      %s326 = smul.u32 2, %s22
      %p327 = scmp.lt.s32.totalorder %s21, 1
      %s328 = scalar_select %p327, %s21, 1
      %p329 = scmp.lt.s32.totalorder %s326, 1
      %s330 = scalar_select %p329, %s326, 1
      %s331 = smul.addr %s328, 2
      %s332 = sadd.s32 %s330, %s331
      %s333 = scalar_lea.vmem %s3, %s332
      %s334 = smul.u32 2, %s22
      %s335 = smul.u32 2, %s20
      %p336 = scmp.lt.s32.totalorder %s21, 1
      %s337 = scalar_select %p336, %s21, 1
      %p338 = scmp.lt.s32.totalorder %s335, 1
      %s339 = scalar_select %p338, %s335, 1
      %s340 = smul.addr %s337, 2
      %s341 = sadd.s32 %s339, %s340
      %s342 = scalar_lea.vmem %s4, %s341
      %s343 = smul.u32 2, %s20
      %p344 = scmp.eq.s32.totalorder %s22, 0
      // Predicated region
      $region37: #{con_loss.1} parent=35 // pred_check
        %p345 = pneg %p344
      $region38: #{con_loss.1} parent=35 // pred_check_branch
        %347 = sbr.rel (%p345) target = $region40
      $region39: #{con_loss.1} parent=35 // pred_region
        %v348 = vld [vmem:[%s305] sm:$0xff]
        %v349 = vld [vmem:[%s305 + $0x8] sm:$0xff]
        %v350 = vld [vmem:[%s305 + $0x10] sm:$0xff]
        %v351 = vld [vmem:[%s305 + $0x18] sm:$0xff]
        %v352 = vld [vmem:[%s314] sm:$0x3]
        %v354 = vlaneseq
        %v355 = vshrl.u32 %v354, 7
        %v356 = vsub.s32 0, %v355
        %v357 = vrot.slane %v352, %v356
        %v358 = vlaneseq
        %v359 = vshrl.u32 %v358, 7
        %v360 = vsub.s32 1, %v359
        %v361 = vrot.slane %v352, %v360
        %v364 = vmul.f32 %v348, %v357
        %v365 = vmul.f32 %v349, %v361
        %v366 = vmul.f32 %v350, %v357
        %v367 = vmul.f32 %v351, %v361
        %368 = vst [vmem:[#allocation2] sm:$0xff] %v364
        %369 = vst [vmem:[#allocation2 + $0x8] sm:$0xff] %v365
        %370 = vst [vmem:[#allocation2 + $0x10] sm:$0xff] %v366
        %371 = vst [vmem:[#allocation2 + $0x18] sm:$0xff] %v367
        %v372 = vlaneseq
        %vm373 = vcmp.ge.s32.totalorder %v372, 0
        %vm374 = vcmp.lt.s32.totalorder %v372, 256
        %vm375 = vmand %vm373, %vm374
        %376 = vst.msk [vmem:[#allocation3] sm:$0x3] %vm375, 0.0
      $region40: #{con_loss.1} parent=35 // pred_fallthru
        _
      %v377 = vld [vmem:[%s324] sm:$0xff]
      %v378 = vld [vmem:[%s324 + $0x8] sm:$0xff]
      %v379 = vld [vmem:[%s324 + $0x10] sm:$0xff]
      %v380 = vld [vmem:[%s324 + $0x18] sm:$0xff]
      %v381 = vld [vmem:[%s333] sm:$0x3]
      %v383 = vlaneseq
      %v384 = vshrl.u32 %v383, 7
      %v385 = vsub.s32 0, %v384
      %v386 = vrot.slane %v381, %v385
      %v387 = vlaneseq
      %v388 = vshrl.u32 %v387, 7
      %v389 = vsub.s32 1, %v388
      %v390 = vrot.slane %v381, %v389
      %v393 = vmul.f32 %v377, %v386
      %v394 = vmul.f32 %v378, %v390
      %v395 = vmul.f32 %v379, %v386
      %v396 = vmul.f32 %v380, %v390
      %v397 = vld [vmem:[#allocation2] sm:$0xff]
      %v398 = vld [vmem:[#allocation2 + $0x8] sm:$0xff]
      %v399 = vld [vmem:[#allocation2 + $0x10] sm:$0xff]
      %v400 = vld [vmem:[#allocation2 + $0x18] sm:$0xff]
      %p401 = scmp.eq.s32.totalorder %s22, %s20
      // Predicated region
      $region41: #{con_loss.1} parent=35 // pred_check
        %p402 = pneg %p401
      $region42: #{con_loss.1} parent=35 // pred_check_branch
        %404 = sbr.rel (%p402) target = $region44
      $region43: #{con_loss.1} parent=35 // pred_region
        %v405 = vmul.f32 %v397, %v393
        %v406 = vmul.f32 %v398, %v394
        %v407 = vmul.f32 %v399, %v395
        %v408 = vmul.f32 %v400, %v396
        %v409 = vadd.f32 %v405, %v407
        %v410 = vrot.slane %v409, 4
        %v411 = vadd.f32 %v409, %v410
        %v412 = vrot.slane %v411, 2
        %v413 = vadd.f32 %v411, %v412
        %v414 = vrot.slane %v413, 1
        %v415 = vadd.f32 %v413, %v414
        %v416 = vadd.f32 %v406, %v408
        %v417 = vrot.slane %v416, 4
        %v418 = vadd.f32 %v416, %v417
        %v419 = vrot.slane %v418, 2
        %v420 = vadd.f32 %v418, %v419
        %v421 = vrot.slane %v420, 1
        %v422 = vadd.f32 %v420, %v421
        %v425 = vcombine.low %v415, %v422
        %v427 = vunpack.c.l.s4 1966171168
        %v428 = vunpack.c.0.s8 %v427
        %v429 = vlaneseq
        %v430 = vshrl.u32 %v429, 7
        %v431 = vsub.s32 %v428, %v430
        %v432 = vrot.slane %v425, %v431
        %v434 = vunpack.c.l.s4 1966171168
        %v435 = vunpack.c.0.s8 %v434
        %v436 = vlaneseq
        %v437 = vshrl.u32 %v436, 7
        %v438 = vsub.s32 %v435, %v437
        %v439 = vrot.slane %v432, %v438
        %v441 = vlaneseq
        %vm442 = vcmp.ge.s32.totalorder %v441, 0
        %vm443 = vcmp.lt.s32.totalorder %v441, 256
        %vm444 = vmand %vm442, %vm443
        %445 = vst.msk [vmem:[#allocation5] sm:$0x3] %vm444, %v439
      $region44: #{con_loss.1} parent=35 // pred_fallthru
        _
      %446 = vxpose.xlu0.b32.start [1/16] %v393, 128
      %447 = vxpose.xlu0.b32.cont [2/16] %v395, 128
      %448 = vxpose.xlu0.b32.cont [3/16] 0.0, 128
      %449 = vxpose.xlu0.b32.cont [4/16] 0.0, 128
      %450 = vxpose.xlu0.b32.cont [5/16] 0.0, 128
      %451 = vxpose.xlu0.b32.cont [6/16] 0.0, 128
      %452 = vxpose.xlu0.b32.cont [7/16] 0.0, 128
      %453 = vxpose.xlu0.b32.cont [8/16] 0.0, 128
      %454 = vxpose.xlu0.b32.cont [9/16] 0.0, 128
      %455 = vxpose.xlu0.b32.cont [10/16] 0.0, 128
      %456 = vxpose.xlu0.b32.cont [11/16] 0.0, 128
      %457 = vxpose.xlu0.b32.cont [12/16] 0.0, 128
      %458 = vxpose.xlu0.b32.cont [13/16] 0.0, 128
      %459 = vxpose.xlu0.b32.cont [14/16] 0.0, 128
      %460 = vxpose.xlu0.b32.cont [15/16] 0.0, 128
      %461 = vxpose.xlu0.b32.end [16/16] 0.0, 128
      %v462 = vpop.trf.xlu0
      %v463 = vpop.trf.xlu0
      %v464 = vpop.trf.xlu0
      %v465 = vpop.trf.xlu0
      %v466 = vpop.trf.xlu0
      %v467 = vpop.trf.xlu0
      %v468 = vpop.trf.xlu0
      %v469 = vpop.trf.xlu0
      %v470 = vpop.trf.xlu0
      %v471 = vpop.trf.xlu0
      %v472 = vpop.trf.xlu0
      %v473 = vpop.trf.xlu0
      %v474 = vpop.trf.xlu0
      %v475 = vpop.trf.xlu0
      %v476 = vpop.trf.xlu0
      %v477 = vpop.trf.xlu0
      %478 = vxpose.xlu0.b32.start [1/16] %v394, 128
      %479 = vxpose.xlu0.b32.cont [2/16] %v396, 128
      %480 = vxpose.xlu0.b32.cont [3/16] 0.0, 128
      %481 = vxpose.xlu0.b32.cont [4/16] 0.0, 128
      %482 = vxpose.xlu0.b32.cont [5/16] 0.0, 128
      %483 = vxpose.xlu0.b32.cont [6/16] 0.0, 128
      %484 = vxpose.xlu0.b32.cont [7/16] 0.0, 128
      %485 = vxpose.xlu0.b32.cont [8/16] 0.0, 128
      %486 = vxpose.xlu0.b32.cont [9/16] 0.0, 128
      %487 = vxpose.xlu0.b32.cont [10/16] 0.0, 128
      %488 = vxpose.xlu0.b32.cont [11/16] 0.0, 128
      %489 = vxpose.xlu0.b32.cont [12/16] 0.0, 128
      %490 = vxpose.xlu0.b32.cont [13/16] 0.0, 128
      %491 = vxpose.xlu0.b32.cont [14/16] 0.0, 128
      %492 = vxpose.xlu0.b32.cont [15/16] 0.0, 128
      %493 = vxpose.xlu0.b32.end [16/16] 0.0, 128
      %v494 = vpop.trf.xlu0
      %v495 = vpop.trf.xlu0
      %v496 = vpop.trf.xlu0
      %v497 = vpop.trf.xlu0
      %v498 = vpop.trf.xlu0
      %v499 = vpop.trf.xlu0
      %v500 = vpop.trf.xlu0
      %v501 = vpop.trf.xlu0
      %v502 = vpop.trf.xlu0
      %v503 = vpop.trf.xlu0
      %v504 = vpop.trf.xlu0
      %v505 = vpop.trf.xlu0
      %v506 = vpop.trf.xlu0
      %v507 = vpop.trf.xlu0
      %v508 = vpop.trf.xlu0
      %v509 = vpop.trf.xlu0
      %vm510 = vcmask 130048
      %v512 = vsel %vm510, %v462, 0
      %v515 = vsel %vm510, %v463, 0
      %v518 = vsel %vm510, %v464, 0
      %v521 = vsel %vm510, %v465, 0
      %v524 = vsel %vm510, %v466, 0
      %v527 = vsel %vm510, %v467, 0
      %v530 = vsel %vm510, %v468, 0
      %v533 = vsel %vm510, %v469, 0
      %v536 = vsel %vm510, %v470, 0
      %v539 = vsel %vm510, %v471, 0
      %v542 = vsel %vm510, %v472, 0
      %v545 = vsel %vm510, %v473, 0
      %v548 = vsel %vm510, %v474, 0
      %v551 = vsel %vm510, %v475, 0
      %v554 = vsel %vm510, %v476, 0
      %v557 = vsel %vm510, %v477, 0
      %v560 = vsel %vm510, %v494, 0
      %v563 = vsel %vm510, %v495, 0
      %v566 = vsel %vm510, %v496, 0
      %v569 = vsel %vm510, %v497, 0
      %v572 = vsel %vm510, %v498, 0
      %v575 = vsel %vm510, %v499, 0
      %v578 = vsel %vm510, %v500, 0
      %v581 = vsel %vm510, %v501, 0
      %v584 = vsel %vm510, %v502, 0
      %v587 = vsel %vm510, %v503, 0
      %v590 = vsel %vm510, %v504, 0
      %v593 = vsel %vm510, %v505, 0
      %v596 = vsel %vm510, %v506, 0
      %v599 = vsel %vm510, %v507, 0
      %v602 = vsel %vm510, %v508, 0
      %v605 = vsel %vm510, %v509, 0
      %607 = vmatprep.subr.mxu0 %v398
      %608 = vmatpush1.msra.mxu0 %v397
      %609 = vmatprep.subr.mxu0 %v400
      %610 = vmatpush1.msra.mxu0 %v399
      %611 = vmatprep.subr.mxu0 0.0
      %612 = vmatpush1.msra.mxu0 0.0
      %613 = vmatprep.subr.mxu0 0.0
      %614 = vmatpush1.msra.mxu0 0.0
      %615 = vmatprep.subr.mxu0 0.0
      %616 = vmatpush1.msra.mxu0 0.0
      %617 = vmatprep.subr.mxu0 0.0
      %618 = vmatpush1.msra.mxu0 0.0
      %619 = vmatprep.subr.mxu0 0.0
      %620 = vmatpush1.msra.mxu0 0.0
      %621 = vmatprep.subr.mxu0 0.0
      %622 = vmatpush1.msra.mxu0 0.0
      %623 = vmatprep.subr.mxu0 0.0
      %624 = vmatpush1.msra.mxu0 0.0
      %625 = vmatprep.subr.mxu0 0.0
      %626 = vmatpush1.msra.mxu0 0.0
      %627 = vmatprep.subr.mxu0 0.0
      %628 = vmatpush1.msra.mxu0 0.0
      %629 = vmatprep.subr.mxu0 0.0
      %630 = vmatpush1.msra.mxu0 0.0
      %631 = vmatprep.subr.mxu0 0.0
      %632 = vmatpush1.msra.mxu0 0.0
      %633 = vmatprep.subr.mxu0 0.0
      %634 = vmatpush1.msra.mxu0 0.0
      %635 = vmatprep.subr.mxu0 0.0
      %636 = vmatpush1.msra.mxu0 0.0
      %637 = vmatprep.subr.mxu0 0.0
      %638 = vmatpush1.msra.mxu0 0.0
      %639 = vmatprep.subr.mxu0 0.0
      %640 = vmatpush1.msra.mxu0 0.0
      %641 = vmatprep.subr.mxu0 0.0
      %642 = vmatpush1.msra.mxu0 0.0
      %643 = vmatprep.subr.mxu0 0.0
      %644 = vmatpush1.msra.mxu0 0.0
      %645 = vmatprep.subr.mxu0 0.0
      %646 = vmatpush1.msra.mxu0 0.0
      %647 = vmatprep.subr.mxu0 0.0
      %648 = vmatpush1.msra.mxu0 0.0
      %649 = vmatprep.subr.mxu0 0.0
      %650 = vmatpush1.msra.mxu0 0.0
      %651 = vmatprep.subr.mxu0 0.0
      %652 = vmatpush1.msra.mxu0 0.0
      %653 = vmatprep.subr.mxu0 0.0
      %654 = vmatpush1.msra.mxu0 0.0
      %655 = vmatprep.subr.mxu0 0.0
      %656 = vmatpush1.msra.mxu0 0.0
      %657 = vmatprep.subr.mxu0 0.0
      %658 = vmatpush1.msra.mxu0 0.0
      %659 = vmatprep.subr.mxu0 0.0
      %660 = vmatpush1.msra.mxu0 0.0
      %661 = vmatprep.subr.mxu0 0.0
      %662 = vmatpush1.msra.mxu0 0.0
      %663 = vmatprep.subr.mxu0 0.0
      %664 = vmatpush1.msra.mxu0 0.0
      %665 = vmatprep.subr.mxu0 0.0
      %666 = vmatpush1.msra.mxu0 0.0
      %667 = vmatprep.subr.mxu0 0.0
      %668 = vmatpush1.msra.mxu0 0.0
      %669 = vmatprep.subr.mxu0 0.0
      %670 = vmatpush1.msra.mxu0 0.0
      %671 = vmatprep.mubr.f32.mxu0 0.0
      %672 = vmatmul.mubr.f32.gmra.mrb[0].mxu0 %v512
      %v673 = vpop.f32.mrb[0].mxu0
      %v674 = vadd.f32 0.0, %v673
      %v675 = vpop.f32.mrb[0].mxu0
      %v676 = vadd.f32 0.0, %v675
      %677 = vmatprep.mubr.f32.mxu0 0.0
      %678 = vmatmul.mubr.f32.gmra.mrb[0].mxu0 %v515
      %v679 = vpop.f32.mrb[0].mxu0
      %v680 = vadd.f32 0.0, %v679
      %v681 = vpop.f32.mrb[0].mxu0
      %v682 = vadd.f32 0.0, %v681
      %683 = vmatprep.mubr.f32.mxu0 0.0
      %684 = vmatmul.mubr.f32.gmra.mrb[0].mxu0 %v518
      %v685 = vpop.f32.mrb[0].mxu0
      %v686 = vadd.f32 0.0, %v685
      %v687 = vpop.f32.mrb[0].mxu0
      %v688 = vadd.f32 0.0, %v687
      %689 = vmatprep.mubr.f32.mxu0 0.0
      %690 = vmatmul.mubr.f32.gmra.mrb[0].mxu0 %v521
      %v691 = vpop.f32.mrb[0].mxu0
      %v692 = vadd.f32 0.0, %v691
      %v693 = vpop.f32.mrb[0].mxu0
      %v694 = vadd.f32 0.0, %v693
      %695 = vmatprep.mubr.f32.mxu0 0.0
      %696 = vmatmul.mubr.f32.gmra.mrb[0].mxu0 %v524
      %v697 = vpop.f32.mrb[0].mxu0
      %v698 = vadd.f32 0.0, %v697
      %v699 = vpop.f32.mrb[0].mxu0
      %v700 = vadd.f32 0.0, %v699
      %701 = vmatprep.mubr.f32.mxu0 0.0
      %702 = vmatmul.mubr.f32.gmra.mrb[0].mxu0 %v527
      %v703 = vpop.f32.mrb[0].mxu0
      %v704 = vadd.f32 0.0, %v703
      %v705 = vpop.f32.mrb[0].mxu0
      %v706 = vadd.f32 0.0, %v705
      %707 = vmatprep.mubr.f32.mxu0 0.0
      %708 = vmatmul.mubr.f32.gmra.mrb[0].mxu0 %v530
      %v709 = vpop.f32.mrb[0].mxu0
      %v710 = vadd.f32 0.0, %v709
      %v711 = vpop.f32.mrb[0].mxu0
      %v712 = vadd.f32 0.0, %v711
      %713 = vmatprep.mubr.f32.mxu0 0.0
      %714 = vmatmul.mubr.f32.gmra.mrb[0].mxu0 %v533
      %v715 = vpop.f32.mrb[0].mxu0
      %v716 = vadd.f32 0.0, %v715
      %v717 = vpop.f32.mrb[0].mxu0
      %v718 = vadd.f32 0.0, %v717
      %719 = vmatprep.mubr.f32.mxu0 0.0
      %720 = vmatmul.mubr.f32.gmra.mrb[0].mxu0 %v536
      %v721 = vpop.f32.mrb[0].mxu0
      %v722 = vadd.f32 0.0, %v721
      %v723 = vpop.f32.mrb[0].mxu0
      %v724 = vadd.f32 0.0, %v723
      %725 = vmatprep.mubr.f32.mxu0 0.0
      %726 = vmatmul.mubr.f32.gmra.mrb[0].mxu0 %v539
      %v727 = vpop.f32.mrb[0].mxu0
      %v728 = vadd.f32 0.0, %v727
      %v729 = vpop.f32.mrb[0].mxu0
      %v730 = vadd.f32 0.0, %v729
      %731 = vmatprep.mubr.f32.mxu0 0.0
      %732 = vmatmul.mubr.f32.gmra.mrb[0].mxu0 %v542
      %v733 = vpop.f32.mrb[0].mxu0
      %v734 = vadd.f32 0.0, %v733
      %v735 = vpop.f32.mrb[0].mxu0
      %v736 = vadd.f32 0.0, %v735
      %737 = vmatprep.mubr.f32.mxu0 0.0
      %738 = vmatmul.mubr.f32.gmra.mrb[0].mxu0 %v545
      %v739 = vpop.f32.mrb[0].mxu0
      %v740 = vadd.f32 0.0, %v739
      %v741 = vpop.f32.mrb[0].mxu0
      %v742 = vadd.f32 0.0, %v741
      %743 = vmatprep.mubr.f32.mxu0 0.0
      %744 = vmatmul.mubr.f32.gmra.mrb[0].mxu0 %v548
      %v745 = vpop.f32.mrb[0].mxu0
      %v746 = vadd.f32 0.0, %v745
      %v747 = vpop.f32.mrb[0].mxu0
      %v748 = vadd.f32 0.0, %v747
      %749 = vmatprep.mubr.f32.mxu0 0.0
      %750 = vmatmul.mubr.f32.gmra.mrb[0].mxu0 %v551
      %v751 = vpop.f32.mrb[0].mxu0
      %v752 = vadd.f32 0.0, %v751
      %v753 = vpop.f32.mrb[0].mxu0
      %v754 = vadd.f32 0.0, %v753
      %755 = vmatprep.mubr.f32.mxu0 0.0
      %756 = vmatmul.mubr.f32.gmra.mrb[0].mxu0 %v554
      %v757 = vpop.f32.mrb[0].mxu0
      %v758 = vadd.f32 0.0, %v757
      %v759 = vpop.f32.mrb[0].mxu0
      %v760 = vadd.f32 0.0, %v759
      %761 = vmatprep.mubr.f32.mxu0 0.0
      %762 = vmatmul.mubr.f32.gmra.mrb[0].mxu0 %v557
      %v763 = vpop.f32.mrb[0].mxu0
      %v764 = vadd.f32 0.0, %v763
      %v765 = vpop.f32.mrb[0].mxu0
      %v766 = vadd.f32 0.0, %v765
      %767 = vmatprep.mubr.f32.mxu0 0.0
      %768 = vmatmul.mubr.f32.gmra.mrb[0].mxu0 %v560
      %v769 = vpop.f32.mrb[0].mxu0
      %v770 = vadd.f32 0.0, %v769
      %v771 = vpop.f32.mrb[0].mxu0
      %v772 = vadd.f32 0.0, %v771
      %773 = vmatprep.mubr.f32.mxu0 0.0
      %774 = vmatmul.mubr.f32.gmra.mrb[0].mxu0 %v563
      %v775 = vpop.f32.mrb[0].mxu0
      %v776 = vadd.f32 0.0, %v775
      %v777 = vpop.f32.mrb[0].mxu0
      %v778 = vadd.f32 0.0, %v777
      %779 = vmatprep.mubr.f32.mxu0 0.0
      %780 = vmatmul.mubr.f32.gmra.mrb[0].mxu0 %v566
      %v781 = vpop.f32.mrb[0].mxu0
      %v782 = vadd.f32 0.0, %v781
      %v783 = vpop.f32.mrb[0].mxu0
      %v784 = vadd.f32 0.0, %v783
      %785 = vmatprep.mubr.f32.mxu0 0.0
      %786 = vmatmul.mubr.f32.gmra.mrb[0].mxu0 %v569
      %v787 = vpop.f32.mrb[0].mxu0
      %v788 = vadd.f32 0.0, %v787
      %v789 = vpop.f32.mrb[0].mxu0
      %v790 = vadd.f32 0.0, %v789
      %791 = vmatprep.mubr.f32.mxu0 0.0
      %792 = vmatmul.mubr.f32.gmra.mrb[0].mxu0 %v572
      %v793 = vpop.f32.mrb[0].mxu0
      %v794 = vadd.f32 0.0, %v793
      %v795 = vpop.f32.mrb[0].mxu0
      %v796 = vadd.f32 0.0, %v795
      %797 = vmatprep.mubr.f32.mxu0 0.0
      %798 = vmatmul.mubr.f32.gmra.mrb[0].mxu0 %v575
      %v799 = vpop.f32.mrb[0].mxu0
      %v800 = vadd.f32 0.0, %v799
      %v801 = vpop.f32.mrb[0].mxu0
      %v802 = vadd.f32 0.0, %v801
      %803 = vmatprep.mubr.f32.mxu0 0.0
      %804 = vmatmul.mubr.f32.gmra.mrb[0].mxu0 %v578
      %v805 = vpop.f32.mrb[0].mxu0
      %v806 = vadd.f32 0.0, %v805
      %v807 = vpop.f32.mrb[0].mxu0
      %v808 = vadd.f32 0.0, %v807
      %809 = vmatprep.mubr.f32.mxu0 0.0
      %810 = vmatmul.mubr.f32.gmra.mrb[0].mxu0 %v581
      %v811 = vpop.f32.mrb[0].mxu0
      %v812 = vadd.f32 0.0, %v811
      %v813 = vpop.f32.mrb[0].mxu0
      %v814 = vadd.f32 0.0, %v813
      %815 = vmatprep.mubr.f32.mxu0 0.0
      %816 = vmatmul.mubr.f32.gmra.mrb[0].mxu0 %v584
      %v817 = vpop.f32.mrb[0].mxu0
      %v818 = vadd.f32 0.0, %v817
      %v819 = vpop.f32.mrb[0].mxu0
      %v820 = vadd.f32 0.0, %v819
      %821 = vmatprep.mubr.f32.mxu0 0.0
      %822 = vmatmul.mubr.f32.gmra.mrb[0].mxu0 %v587
      %v823 = vpop.f32.mrb[0].mxu0
      %v824 = vadd.f32 0.0, %v823
      %v825 = vpop.f32.mrb[0].mxu0
      %v826 = vadd.f32 0.0, %v825
      %827 = vmatprep.mubr.f32.mxu0 0.0
      %828 = vmatmul.mubr.f32.gmra.mrb[0].mxu0 %v590
      %v829 = vpop.f32.mrb[0].mxu0
      %v830 = vadd.f32 0.0, %v829
      %v831 = vpop.f32.mrb[0].mxu0
      %v832 = vadd.f32 0.0, %v831
      %833 = vmatprep.mubr.f32.mxu0 0.0
      %834 = vmatmul.mubr.f32.gmra.mrb[0].mxu0 %v593
      %v835 = vpop.f32.mrb[0].mxu0
      %v836 = vadd.f32 0.0, %v835
      %v837 = vpop.f32.mrb[0].mxu0
      %v838 = vadd.f32 0.0, %v837
      %839 = vmatprep.mubr.f32.mxu0 0.0
      %840 = vmatmul.mubr.f32.gmra.mrb[0].mxu0 %v596
      %v841 = vpop.f32.mrb[0].mxu0
      %v842 = vadd.f32 0.0, %v841
      %v843 = vpop.f32.mrb[0].mxu0
      %v844 = vadd.f32 0.0, %v843
      %845 = vmatprep.mubr.f32.mxu0 0.0
      %846 = vmatmul.mubr.f32.gmra.mrb[0].mxu0 %v599
      %v847 = vpop.f32.mrb[0].mxu0
      %v848 = vadd.f32 0.0, %v847
      %v849 = vpop.f32.mrb[0].mxu0
      %v850 = vadd.f32 0.0, %v849
      %851 = vmatprep.mubr.f32.mxu0 0.0
      %852 = vmatmul.mubr.f32.gmra.mrb[0].mxu0 %v602
      %v853 = vpop.f32.mrb[0].mxu0
      %v854 = vadd.f32 0.0, %v853
      %v855 = vpop.f32.mrb[0].mxu0
      %v856 = vadd.f32 0.0, %v855
      %857 = vmatprep.mubr.f32.mxu0 0.0
      %858 = vmatmul.mubr.f32.gmra.mrb[0].mxu0 %v605
      %v859 = vpop.f32.mrb[0].mxu0
      %v860 = vadd.f32 0.0, %v859
      %v861 = vpop.f32.mrb[0].mxu0
      %v862 = vadd.f32 0.0, %v861
      %863 = vdwg.mxu0
      %v864 = vld [vmem:[#allocation3] sm:$0x3]
      %v865 = vsub.f32 %v674, 14.285714
      %v866 = vsub.f32 %v676, 14.285714
      %v867 = vsub.f32 %v680, 14.285714
      %v868 = vsub.f32 %v682, 14.285714
      %v869 = vsub.f32 %v686, 14.285714
      %v870 = vsub.f32 %v688, 14.285714
      %v871 = vsub.f32 %v692, 14.285714
      %v872 = vsub.f32 %v694, 14.285714
      %v873 = vsub.f32 %v698, 14.285714
      %v874 = vsub.f32 %v700, 14.285714
      %v875 = vsub.f32 %v704, 14.285714
      %v876 = vsub.f32 %v706, 14.285714
      %v877 = vsub.f32 %v710, 14.285714
      %v878 = vsub.f32 %v712, 14.285714
      %v879 = vsub.f32 %v716, 14.285714
      %v880 = vsub.f32 %v718, 14.285714
      %v881 = vsub.f32 %v722, 14.285714
      %v882 = vsub.f32 %v724, 14.285714
      %v883 = vsub.f32 %v728, 14.285714
      %v884 = vsub.f32 %v730, 14.285714
      %v885 = vsub.f32 %v734, 14.285714
      %v886 = vsub.f32 %v736, 14.285714
      %v887 = vsub.f32 %v740, 14.285714
      %v888 = vsub.f32 %v742, 14.285714
      %v889 = vsub.f32 %v746, 14.285714
      %v890 = vsub.f32 %v748, 14.285714
      %v891 = vsub.f32 %v752, 14.285714
      %v892 = vsub.f32 %v754, 14.285714
      %v893 = vsub.f32 %v758, 14.285714
      %v894 = vsub.f32 %v760, 14.285714
      %v895 = vsub.f32 %v764, 14.285714
      %v896 = vsub.f32 %v766, 14.285714
      %v897 = vsub.f32 %v770, 14.285714
      %v898 = vsub.f32 %v772, 14.285714
      %v899 = vsub.f32 %v776, 14.285714
      %v900 = vsub.f32 %v778, 14.285714
      %v901 = vsub.f32 %v782, 14.285714
      %v902 = vsub.f32 %v784, 14.285714
      %v903 = vsub.f32 %v788, 14.285714
      %v904 = vsub.f32 %v790, 14.285714
      %v905 = vsub.f32 %v794, 14.285714
      %v906 = vsub.f32 %v796, 14.285714
      %v907 = vsub.f32 %v800, 14.285714
      %v908 = vsub.f32 %v802, 14.285714
      %v909 = vsub.f32 %v806, 14.285714
      %v910 = vsub.f32 %v808, 14.285714
      %v911 = vsub.f32 %v812, 14.285714
      %v912 = vsub.f32 %v814, 14.285714
      %v913 = vsub.f32 %v818, 14.285714
      %v914 = vsub.f32 %v820, 14.285714
      %v915 = vsub.f32 %v824, 14.285714
      %v916 = vsub.f32 %v826, 14.285714
      %v917 = vsub.f32 %v830, 14.285714
      %v918 = vsub.f32 %v832, 14.285714
      %v919 = vsub.f32 %v836, 14.285714
      %v920 = vsub.f32 %v838, 14.285714
      %v921 = vsub.f32 %v842, 14.285714
      %v922 = vsub.f32 %v844, 14.285714
      %v923 = vsub.f32 %v848, 14.285714
      %v924 = vsub.f32 %v850, 14.285714
      %v925 = vsub.f32 %v854, 14.285714
      %v926 = vsub.f32 %v856, 14.285714
      %v927 = vsub.f32 %v860, 14.285714
      %v928 = vsub.f32 %v862, 14.285714
      %v929 = vmul.f32 %v865, 1.442695
      %v930 = vpow.pop %v929
      %v931 = vmul.f32 %v866, 1.442695
      %v932 = vpow.pop %v931
      %v933 = vmul.f32 %v867, 1.442695
      %v934 = vpow.pop %v933
      %v935 = vmul.f32 %v868, 1.442695
      %v936 = vpow.pop %v935
      %v937 = vmul.f32 %v869, 1.442695
      %v938 = vpow.pop %v937
      %v939 = vmul.f32 %v870, 1.442695
      %v940 = vpow.pop %v939
      %v941 = vmul.f32 %v871, 1.442695
      %v942 = vpow.pop %v941
      %v943 = vmul.f32 %v872, 1.442695
      %v944 = vpow.pop %v943
      %v945 = vmul.f32 %v873, 1.442695
      %v946 = vpow.pop %v945
      %v947 = vmul.f32 %v874, 1.442695
      %v948 = vpow.pop %v947
      %v949 = vmul.f32 %v875, 1.442695
      %v950 = vpow.pop %v949
      %v951 = vmul.f32 %v876, 1.442695
      %v952 = vpow.pop %v951
      %v953 = vmul.f32 %v877, 1.442695
      %v954 = vpow.pop %v953
      %v955 = vmul.f32 %v878, 1.442695
      %v956 = vpow.pop %v955
      %v957 = vmul.f32 %v879, 1.442695
      %v958 = vpow.pop %v957
      %v959 = vmul.f32 %v880, 1.442695
      %v960 = vpow.pop %v959
      %v961 = vmul.f32 %v881, 1.442695
      %v962 = vpow.pop %v961
      %v963 = vmul.f32 %v882, 1.442695
      %v964 = vpow.pop %v963
      %v965 = vmul.f32 %v883, 1.442695
      %v966 = vpow.pop %v965
      %v967 = vmul.f32 %v884, 1.442695
      %v968 = vpow.pop %v967
      %v969 = vmul.f32 %v885, 1.442695
      %v970 = vpow.pop %v969
      %v971 = vmul.f32 %v886, 1.442695
      %v972 = vpow.pop %v971
      %v973 = vmul.f32 %v887, 1.442695
      %v974 = vpow.pop %v973
      %v975 = vmul.f32 %v888, 1.442695
      %v976 = vpow.pop %v975
      %v977 = vmul.f32 %v889, 1.442695
      %v978 = vpow.pop %v977
      %v979 = vmul.f32 %v890, 1.442695
      %v980 = vpow.pop %v979
      %v981 = vmul.f32 %v891, 1.442695
      %v982 = vpow.pop %v981
      %v983 = vmul.f32 %v892, 1.442695
      %v984 = vpow.pop %v983
      %v985 = vmul.f32 %v893, 1.442695
      %v986 = vpow.pop %v985
      %v987 = vmul.f32 %v894, 1.442695
      %v988 = vpow.pop %v987
      %v989 = vmul.f32 %v895, 1.442695
      %v990 = vpow.pop %v989
      %v991 = vmul.f32 %v896, 1.442695
      %v992 = vpow.pop %v991
      %v993 = vmul.f32 %v897, 1.442695
      %v994 = vpow.pop %v993
      %v995 = vmul.f32 %v898, 1.442695
      %v996 = vpow.pop %v995
      %v997 = vmul.f32 %v899, 1.442695
      %v998 = vpow.pop %v997
      %v999 = vmul.f32 %v900, 1.442695
      %v1000 = vpow.pop %v999
      %v1001 = vmul.f32 %v901, 1.442695
      %v1002 = vpow.pop %v1001
      %v1003 = vmul.f32 %v902, 1.442695
      %v1004 = vpow.pop %v1003
      %v1005 = vmul.f32 %v903, 1.442695
      %v1006 = vpow.pop %v1005
      %v1007 = vmul.f32 %v904, 1.442695
      %v1008 = vpow.pop %v1007
      %v1009 = vmul.f32 %v905, 1.442695
      %v1010 = vpow.pop %v1009
      %v1011 = vmul.f32 %v906, 1.442695
      %v1012 = vpow.pop %v1011
      %v1013 = vmul.f32 %v907, 1.442695
      %v1014 = vpow.pop %v1013
      %v1015 = vmul.f32 %v908, 1.442695
      %v1016 = vpow.pop %v1015
      %v1017 = vmul.f32 %v909, 1.442695
      %v1018 = vpow.pop %v1017
      %v1019 = vmul.f32 %v910, 1.442695
      %v1020 = vpow.pop %v1019
      %v1021 = vmul.f32 %v911, 1.442695
      %v1022 = vpow.pop %v1021
      %v1023 = vmul.f32 %v912, 1.442695
      %v1024 = vpow.pop %v1023
      %v1025 = vmul.f32 %v913, 1.442695
      %v1026 = vpow.pop %v1025
      %v1027 = vmul.f32 %v914, 1.442695
      %v1028 = vpow.pop %v1027
      %v1029 = vmul.f32 %v915, 1.442695
      %v1030 = vpow.pop %v1029
      %v1031 = vmul.f32 %v916, 1.442695
      %v1032 = vpow.pop %v1031
      %v1033 = vmul.f32 %v917, 1.442695
      %v1034 = vpow.pop %v1033
      %v1035 = vmul.f32 %v918, 1.442695
      %v1036 = vpow.pop %v1035
      %v1037 = vmul.f32 %v919, 1.442695
      %v1038 = vpow.pop %v1037
      %v1039 = vmul.f32 %v920, 1.442695
      %v1040 = vpow.pop %v1039
      %v1041 = vmul.f32 %v921, 1.442695
      %v1042 = vpow.pop %v1041
      %v1043 = vmul.f32 %v922, 1.442695
      %v1044 = vpow.pop %v1043
      %v1045 = vmul.f32 %v923, 1.442695
      %v1046 = vpow.pop %v1045
      %v1047 = vmul.f32 %v924, 1.442695
      %v1048 = vpow.pop %v1047
      %v1049 = vmul.f32 %v925, 1.442695
      %v1050 = vpow.pop %v1049
      %v1051 = vmul.f32 %v926, 1.442695
      %v1052 = vpow.pop %v1051
      %v1053 = vmul.f32 %v927, 1.442695
      %v1054 = vpow.pop %v1053
      %v1055 = vmul.f32 %v928, 1.442695
      %v1056 = vpow.pop %v1055
      %v1057 = vadd.f32 %v930, %v934
      %v1058 = vadd.f32 %v1057, %v938
      %v1059 = vadd.f32 %v1058, %v942
      %v1060 = vadd.f32 %v1059, %v946
      %v1061 = vadd.f32 %v1060, %v950
      %v1062 = vadd.f32 %v1061, %v954
      %v1063 = vadd.f32 %v1062, %v958
      %v1064 = vadd.f32 %v1063, %v962
      %v1065 = vadd.f32 %v1064, %v966
      %v1066 = vadd.f32 %v1065, %v970
      %v1067 = vadd.f32 %v1066, %v974
      %v1068 = vadd.f32 %v1067, %v978
      %v1069 = vadd.f32 %v1068, %v982
      %v1070 = vadd.f32 %v1069, %v986
      %v1071 = vadd.f32 %v1070, %v990
      %v1072 = vadd.f32 %v1071, %v994
      %v1073 = vadd.f32 %v1072, %v998
      %v1074 = vadd.f32 %v1073, %v1002
      %v1075 = vadd.f32 %v1074, %v1006
      %v1076 = vadd.f32 %v1075, %v1010
      %v1077 = vadd.f32 %v1076, %v1014
      %v1078 = vadd.f32 %v1077, %v1018
      %v1079 = vadd.f32 %v1078, %v1022
      %v1080 = vadd.f32 %v1079, %v1026
      %v1081 = vadd.f32 %v1080, %v1030
      %v1082 = vadd.f32 %v1081, %v1034
      %v1083 = vadd.f32 %v1082, %v1038
      %v1084 = vadd.f32 %v1083, %v1042
      %v1085 = vadd.f32 %v1084, %v1046
      %v1086 = vadd.f32 %v1085, %v1050
      %v1087 = vadd.f32 %v1086, %v1054
      %v1088 = vrot.slane %v1087, 4
      %v1089 = vadd.f32 %v1087, %v1088
      %v1090 = vrot.slane %v1089, 2
      %v1091 = vadd.f32 %v1089, %v1090
      %v1092 = vrot.slane %v1091, 1
      %v1093 = vadd.f32 %v1091, %v1092
      %v1094 = vadd.f32 %v932, %v936
      %v1095 = vadd.f32 %v1094, %v940
      %v1096 = vadd.f32 %v1095, %v944
      %v1097 = vadd.f32 %v1096, %v948
      %v1098 = vadd.f32 %v1097, %v952
      %v1099 = vadd.f32 %v1098, %v956
      %v1100 = vadd.f32 %v1099, %v960
      %v1101 = vadd.f32 %v1100, %v964
      %v1102 = vadd.f32 %v1101, %v968
      %v1103 = vadd.f32 %v1102, %v972
      %v1104 = vadd.f32 %v1103, %v976
      %v1105 = vadd.f32 %v1104, %v980
      %v1106 = vadd.f32 %v1105, %v984
      %v1107 = vadd.f32 %v1106, %v988
      %v1108 = vadd.f32 %v1107, %v992
      %v1109 = vadd.f32 %v1108, %v996
      %v1110 = vadd.f32 %v1109, %v1000
      %v1111 = vadd.f32 %v1110, %v1004
      %v1112 = vadd.f32 %v1111, %v1008
      %v1113 = vadd.f32 %v1112, %v1012
      %v1114 = vadd.f32 %v1113, %v1016
      %v1115 = vadd.f32 %v1114, %v1020
      %v1116 = vadd.f32 %v1115, %v1024
      %v1117 = vadd.f32 %v1116, %v1028
      %v1118 = vadd.f32 %v1117, %v1032
      %v1119 = vadd.f32 %v1118, %v1036
      %v1120 = vadd.f32 %v1119, %v1040
      %v1121 = vadd.f32 %v1120, %v1044
      %v1122 = vadd.f32 %v1121, %v1048
      %v1123 = vadd.f32 %v1122, %v1052
      %v1124 = vadd.f32 %v1123, %v1056
      %v1125 = vrot.slane %v1124, 4
      %v1126 = vadd.f32 %v1124, %v1125
      %v1127 = vrot.slane %v1126, 2
      %v1128 = vadd.f32 %v1126, %v1127
      %v1129 = vrot.slane %v1128, 1
      %v1130 = vadd.f32 %v1128, %v1129
      %v1133 = vcombine.low %v1093, %v1130
      %v1135 = vunpack.c.l.s4 1966171168
      %v1136 = vunpack.c.0.s8 %v1135
      %v1137 = vlaneseq
      %v1138 = vshrl.u32 %v1137, 7
      %v1139 = vsub.s32 %v1136, %v1138
      %v1140 = vrot.slane %v1133, %v1139
      %v1142 = vunpack.c.l.s4 1966171168
      %v1143 = vunpack.c.0.s8 %v1142
      %v1144 = vlaneseq
      %v1145 = vshrl.u32 %v1144, 7
      %v1146 = vsub.s32 %v1143, %v1145
      %v1147 = vrot.slane %v1140, %v1146
      %v1149 = vadd.f32 %v864, %v1147
      %v1150 = vlaneseq
      %vm1151 = vcmp.ge.s32.totalorder %v1150, 0
      %vm1152 = vcmp.lt.s32.totalorder %v1150, 256
      %vm1153 = vmand %vm1151, %vm1152
      %1154 = vst.msk [vmem:[#allocation3] sm:$0x3] %vm1153, %v1149
      // Predicated region
      $region45: #{con_loss.1} parent=35 // pred_check
        %p1155 = pneg %p344
      $region46: #{con_loss.1} parent=35 // pred_check_branch
        %1157 = sbr.rel (%p1155) target = $region48
      $region47: #{con_loss.1} parent=35 // pred_region
        %v1158 = vld [vmem:[#allocation3] sm:$0x3]
        %v1159 = vlog2.pop %v1158
        %v1160 = vmul.f32 %v1159, 0.6931472
        %v1161 = vadd.f32 %v1160, 14.285714
        %v1162 = vld [vmem:[#allocation5] sm:$0x3]
        %v1163 = vsub.f32 %v1161, %v1162
        %1164 = vst.msk [vmem:[%s342] sm:$0x3] %vm1153, %v1163
      $region48: #{con_loss.1} parent=35 // pred_fallthru
        _
      %s1165 = smul.u32 2, %s20
      %p1166 = scmp.lt.s32.totalorder %s21, 1
      %s1167 = scalar_select %p1166, %s21, 1
      %p1168 = scmp.lt.s32.totalorder %s1165, 1
      %s1169 = scalar_select %p1168, %s1165, 1
      %s1170 = smul.addr %s1167, 2
      %s1171 = sadd.s32 %s1169, %s1170
      %s1172 = scalar_lea.vmem %s4, %s1171
      // Predicated region
      $region49: #{con_loss.1} parent=35 // pred_check
        %p1173 = pneg %p166
      $region50: #{con_loss.1} parent=35 // pred_check_branch
        %1175 = sbr.rel (%p1173) target = $region52
      $region51: #{con_loss.1} parent=35 // pred_region
        %s1176 = smul.u32 2, %s20
      $region52: #{con_loss.1} parent=35 // pred_fallthru
        _
    $region36: #{con_loss.1} parent=5 // pred_fallthru
      _
    %p1177 = scmp.le.s32.totalorder 2, %s10
    // Predicated region
    $region53: #{con_loss.1} parent=5 // pred_check
      %p1178 = pneg %p1177
    $region54: #{con_loss.1} parent=5 // pred_check_branch
      %1180 = sbr.rel (%p1178) target = $region56
    $region55: #{con_loss.1} parent=5 // pred_region
      %s1181 = ssub.s32 %s10, 2
      // Predicated region
      $region57: #{con_loss.1} parent=55 // pred_check
        %p1182 = pneg %p172
      $region58: #{con_loss.1} parent=55 // pred_check_branch
        %1184 = sbr.rel (%p1182) target = $region60
      $region59: #{con_loss.1} parent=55 // pred_region
        %s1185 = smul.u32 2, %s23
        %p1186 = scmp.lt.s32.totalorder %s24, 1
        %s1187 = scalar_select %p1186, %s24, 1
        %p1188 = scmp.lt.s32.totalorder %s1185, 1
        %s1189 = scalar_select %p1188, %s1185, 1
        %s1190 = smul.addr %s1187, 2
        %s1191 = sadd.s32 %s1189, %s1190
        %s1192 = scalar_lea.vmem %s4, %s1191
      $region60: #{con_loss.1} parent=55 // pred_fallthru
        _
    $region56: #{con_loss.1} parent=5 // pred_fallthru
      _
  $region6: #{con_loss.1} parent=0 // loop_footer
    %s14 = sadd.s32 1, %s10
  $region7: #{con_loss.1} parent=0 // loop_footer_branch
    %9 = sbr.rel target = $region3
  $region8: #{con_loss.1} parent=0 // loop_exit
    _

</llo_original>
